<compile_context>
chip_gen: v5e
topology: v5e:2x2
jax: 0.10.0
libtpu: 0.0.40
codegen_flags: <defaults>
</compile_context>

<pallas_src>
import functools

import jax
import jax.numpy as jnp
from jax import lax
from jax.experimental import pallas as pl
from jax.experimental.pallas import tpu as pltpu


def _round_up(x, m):
    return (x + m - 1) // m * m


@functools.lru_cache(maxsize=None)
def _roll_matches_jnp_roll():
    """True iff pltpu.roll(x, s, axis)[..., j] == x[..., (j - s) % n] (jnp.roll)."""
    def kernel(x_ref, o_ref):
        o_ref[...] = pltpu.roll(x_ref[...], 1, 1)

    x = jnp.broadcast_to(jnp.arange(128, dtype=jnp.float32), (8, 128))
    out = pl.pallas_call(
        kernel, out_shape=jax.ShapeDtypeStruct((8, 128), jnp.float32))(x)
    return bool(out[0, 0] == 127.0)


def _ipnn_kernel(x_ref, w1a_ref, w1p_ref, b1_ref, w2_ref, b2_ref,
                 w3t_ref, b3_ref, out_ref, *, latent_dim, num_shifts):
    """One batch block: roll-based pair-product fold + 3-layer MLP."""
    D = latent_dim
    x = x_ref[...]                                    # (block_b, F*D) bf16
    xf = x.astype(jnp.float32)                        # f32 pair products (v5e VPU)

    # First layer: dense term + folded pairwise-inner-product terms.
    h = jnp.dot(x, w1a_ref[...], preferred_element_type=jnp.float32)
    for s in range(1, num_shifts + 1):
        rolled = pltpu.roll(xf, s * D, 1)             # XLU lane rotation
        prod = (xf * rolled).astype(jnp.bfloat16)     # full-lane VPU multiply
        h = h + jnp.dot(prod, w1p_ref[s - 1],
                        preferred_element_type=jnp.float32)
    h = jnp.maximum(h + b1_ref[...], 0.0)

    # Second layer.
    h = jnp.dot(h.astype(jnp.bfloat16), w2_ref[...],
                preferred_element_type=jnp.float32) + b2_ref[...]
    h = jnp.maximum(h, 0.0)

    # Final layer as an NT matmul: (1, h2p) x (block_b, h2p)^T -> (1, block_b).
    logit_t = lax.dot_general(
        w3t_ref[...], h.astype(jnp.bfloat16), (((1,), (1,)), ((), ())),
        preferred_element_type=jnp.float32) + b3_ref[...]
    out_ref[...] = logit_t                            # lane-dense (1, block_b)


def inner_product_net_forward(x_idx, params, *, field_num, latent_dim,
                              block_b=2048):
    B = x_idx.shape[0]
    D = latent_dim
    FD = field_num * D
    P = field_num * (field_num - 1) // 2

    # --- Batch tiling (pad the cheap int32 indices, not the activations) ---
    block_b = max(128, _round_up(block_b, 128))
    b_ceil = _round_up(max(B, 1), 128)
    block_b = min(block_b, b_ceil)
    if b_ceil >= 2 * 128:                         # keep >=2 blocks (v7x 2-TC split)
        block_b = min(block_b, _round_up(b_ceil // 2, 128))
    B_pad = _round_up(B, block_b)
    num_blocks = B_pad // block_b
    if B_pad != B:
        x_idx = jnp.pad(x_idx, ((0, B_pad - B), (0, 0)))   # index 0 rows (valid)

    # Embedding gather is glue (data-dependent lookup); cast table to bf16 first
    # so the gather output (the dominant HBM stream) is already half width.
    emb_tbl = params["embedding"].astype(jnp.bfloat16)      # (feat, D)
    x_flat = emb_tbl[x_idx].reshape(B_pad, FD)              # (B_pad, F*D) bf16

    # --- Weight prep (once, outside the kernel) ---
    w1, b1 = params["w1"], params["b1"]
    w2, b2 = params["w2"], params["b2"]
    w3, b3 = params["w3"], params["b3"]
    h1, h2 = w1.shape[1], w2.shape[1]
    h1p = _round_up(h1, 128)
    h2p = _round_up(h2, 128)

    w1a = jnp.pad(w1[:FD], ((0, 0), (0, h1p - h1))).astype(jnp.bfloat16)
    b1p = jnp.pad(b1, ((0, 0), (0, h1p - h1))).astype(jnp.float32)
    w2p = jnp.pad(w2, ((0, h1p - h1), (0, h2p - h2))).astype(jnp.bfloat16)
    b2p = jnp.pad(b2, ((0, 0), (0, h2p - h2))).astype(jnp.float32)
    w3t = jnp.pad(w3.T, ((0, 0), (0, h2p - h2))).astype(jnp.bfloat16)
    b3f = b3.astype(jnp.float32)

    # Pair-interaction weights, rearranged to match the roll-based products:
    # for shift s, block m of prod_s is e_m * e_{(m -/+ s) % F}.
    pair_index = {}
    idx = 0
    for i in range(field_num):
        for j in range(i + 1, field_num):
            pair_index[(i, j)] = idx
            idx += 1
    assert idx == P
    w1b = w1[FD:]                                           # (P, h1)
    num_shifts = field_num // 2
    matches = _roll_matches_jnp_roll()
    blocks = []
    for s in range(1, num_shifts + 1):
        rows = []
        for m in range(field_num):
            partner = (m - s) % field_num if matches else (m + s) % field_num
            dup = (field_num % 2 == 0) and (s == field_num // 2) and (m >= field_num // 2)
            if dup:
                rows.append(jnp.zeros((D, h1), w1.dtype))   # duplicate pair -> zero
            else:
                pair = (min(m, partner), max(m, partner))
                rows.append(jnp.broadcast_to(
                    w1b[pair_index[pair]][None, :], (D, h1)))
        blk = jnp.pad(jnp.concatenate(rows, axis=0), ((0, 0), (0, h1p - h1)))
        blocks.append(blk)
    w1p = jnp.stack(blocks, axis=0).astype(jnp.bfloat16)    # (S, FD, h1p)

    def const_spec(a):
        nd = a.ndim
        return pl.BlockSpec(a.shape, lambda i, _nd=nd: (0,) * _nd)

    flops = int(2 * B_pad * (FD * h1p + num_shifts * FD * h1p + h1p * h2p + h2p)
                + B_pad * num_shifts * FD)
    bytes_accessed = int(2 * (B_pad * FD + w1a.size + w1p.size + w2p.size
                              + w3t.size)
                         + 4 * (B_pad + b1p.size + b2p.size + b3f.size))

    # TODO(synk): on v5e, if profiling shows exposed x DMA, bump the x BlockSpec
    # to pipeline_mode=pl.Buffered(3).
    out = pl.pallas_call(
        functools.partial(_ipnn_kernel, latent_dim=latent_dim,
                          num_shifts=num_shifts),
        out_shape=jax.ShapeDtypeStruct((1, B_pad), jnp.float32),
        grid=(num_blocks,),
        in_specs=[pl.BlockSpec((block_b, FD), lambda i: (i, 0)),
                  const_spec(w1a), const_spec(w1p), const_spec(b1p),
                  const_spec(w2p), const_spec(b2p),
                  const_spec(w3t), const_spec(b3f)],
        out_specs=pl.BlockSpec((1, block_b), lambda i: (0, i)),
        compiler_params=pltpu.CompilerParams(
            dimension_semantics=("parallel",),
            vmem_limit_bytes=32 * 1024 * 1024),
        cost_estimate=pl.CostEstimate(
            flops=flops, transcendentals=0, bytes_accessed=bytes_accessed),
    )(x_flat, w1a, w1p, b1p, w2p, b2p, w3t, b3f)

    return out[0, :B].reshape(B, 1)


def _reference_forward(x_idx, params, *, field_num, latent_dim):
    """Pure-JAX f32 reference mirroring the PyTorch module."""
    emb = params["embedding"][x_idx]                  # (B, F, D)
    B = emb.shape[0]
    x_dnn = emb.reshape(B, field_num * latent_dim)
    pairs = []
    for i in range(field_num):
        for j in range(i + 1, field_num):
            pairs.append(jnp.sum(emb[:, i, :] * emb[:, j, :], axis=-1,
                                 keepdims=True))
    x_ip = jnp.concatenate(pairs, axis=1)
    h = jnp.concatenate([x_dnn, x_ip], axis=1)
    h = jnp.maximum(h @ params["w1"] + params["b1"], 0.0)
    h = jnp.maximum(h @ params["w2"] + params["b2"], 0.0)
    return h @ params["w3"] + params["b3"]


def init_params(key, *, feature_num, field_num, latent_dim, mlp_dims):
    dnn_dim = field_num * latent_dim + field_num * (field_num - 1) // 2
    keys = jax.random.split(key, 8)
    scale = 0.1
    h1, h2 = mlp_dims
    params = {
        "embedding": scale * jax.random.normal(
            keys[0], (feature_num, latent_dim), jnp.float32),
        "w1": scale * jax.random.normal(keys[1], (dnn_dim, h1), jnp.float32),
        "b1": scale * jax.random.normal(keys[2], (1, h1), jnp.float32),
        "w2": scale * jax.random.normal(keys[3], (h1, h2), jnp.float32),
        "b2": scale * jax.random.normal(keys[4], (1, h2), jnp.float32),
        "w3": scale * jax.random.normal(keys[5], (h2, 1), jnp.float32),
        "b3": scale * jax.random.normal(keys[6], (1, 1), jnp.float32),
    }
    return params


if __name__ == "__main__":
    # Small shapes consistent with the module's forward.
    batch = 2
    field_num = 4
    feature_num = 10
    latent_dim = 32
    mlp_dims = (64, 32)

    key = jax.random.PRNGKey(0)
    k_param, k_x = jax.random.split(key)
    params = init_params(k_param, feature_num=feature_num, field_num=field_num,
                         latent_dim=latent_dim, mlp_dims=mlp_dims)
    # x: (batch, field_num) feature indices (embedding lookup input).
    x_idx = jax.random.randint(k_x, (batch, field_num), 0, feature_num,
                               dtype=jnp.int32)

    logit = inner_product_net_forward(x_idx, params, field_num=field_num,
                                      latent_dim=latent_dim)
    logit = jax.block_until_ready(logit)

    ref = _reference_forward(x_idx, params, field_num=field_num,
                             latent_dim=latent_dim)
    assert logit.shape == (batch, 1)
    # bf16 MXU inputs -> loosened tolerance vs the f32 reference.
    assert jnp.allclose(logit, ref, atol=2e-2, rtol=2e-2)
    print("KERNEL_OK")
</pallas_src>

<mosaic_0001>
module attributes {stable_mosaic.version = 11 : i64} {
  func.func @kernel(%arg0: memref<8x128xf32, #tpu.memory_space<vmem>>, %arg1: memref<8x128xf32, #tpu.memory_space<vmem>>) attributes {dimension_semantics = [], scalar_prefetch = 0 : i64, scratch_operands = 0 : i64, tpu.core_type = #tpu.core_type<tc>} {
    %c0 = arith.constant 0 : index
    %c0_0 = arith.constant 0 : index
    %0 = vector.load %arg0[%c0, %c0_0] : memref<8x128xf32, #tpu.memory_space<vmem>>, vector<8x128xf32>
    %c1_i32 = arith.constant 1 : i32
    %1 = tpu.dynamic_rotate %0 by %c1_i32 dim 1 : vector<8x128xf32>, i32 -> vector<8x128xf32>
    %c0_1 = arith.constant 0 : index
    %c0_2 = arith.constant 0 : index
    %2 = vector.load %arg1[%c0_1, %c0_2] : memref<8x128xf32, #tpu.memory_space<vmem>>, vector<8x128xf32>
    tpu.vector_store %arg1[%c0_1, %c0_2], %1 {strides = array<i32>} : memref<8x128xf32, #tpu.memory_space<vmem>>, vector<8x128xf32>,
    return
  }
}

</mosaic_0001>

<llo_original>
// kernel: tpu_custom_call.1
$region0: #{tpu_custom_call.1}
  #allocation0 [shape = 'u32[]', space=smem, size = 0x4, offset = 0x4, fixed_abs, tag = 'smem constant byte address 0x4 - core index']
  #allocation1 [shape = 'u32[72,128]{1,0:T(1,128)}', space=vmem, size = 0x9000, scoped, tag = 'internal scratch']
  %s0 = inlined_call_operand.hbm [shape: f32[8,128], index: 0, kind: input, shape index: {}]
  %s1 = inlined_call_operand.hbm [shape: f32[8,128], index: 1, kind: output, shape index: {}]
  %s2 = sld [smem:[#allocation0]]
  $region18: #{tpu_custom_call.1} parent=0
    _
  %s4 = ssub.s32 1, %s2
  %s5 = scalar_select 0, %s4, %s2
  $region1: #{tpu_custom_call.1} parent=0
    #allocation2 [shape = 'u8[4096]{0}', space=vmem, size = 0x1000, scoped, tag = 'input window, operand 0, single buffered']
    #allocation3 [shape = 's32[1]{0}', space=sflag, size = 0x4, scoped, tag = 'scoped memory for tpu_custom_call.1']
    #allocation4 [shape = 's32[1]{0}', space=sflag, size = 0x4, scoped, tag = 'scoped memory for tpu_custom_call.1']
    #allocation5 [shape = 'u8[4096]{0}', space=vmem, size = 0x1000, scoped, tag = 'output window, operand 0, single buffered']
    %6 = vsyncpa [#allocation3], 0
    %7 = vsyncpa [#allocation4], 0
    // Predicated region
    $region2: #{tpu_custom_call.1} parent=1 // pred_check
      _
    $region3: #{tpu_custom_call.1} parent=1 // pred_check_branch
      %9 = sbr.rel (0) target = $region5
    $region4: #{tpu_custom_call.1} parent=1 // pred_region
      %11 = vsyncadd [#allocation3], 0
      %s13 = sshll.u32 %s0, 4
      %s14 = int_to_ptr.hbm [resolvable:$true] %s13
      %s15 = sshll.u32 [#allocation2], 4
      %s16 = int_to_ptr.vmem [resolvable:$true] %s15
      %18 = dma.hbm_to_vmem [thread:$0]  %s14, 128, %s16, [#allocation3]
    $region5: #{tpu_custom_call.1} parent=1 // pred_fallthru
      _
    // Predicated region
    $region6: #{tpu_custom_call.1} parent=1 // pred_check
      _
    $region7: #{tpu_custom_call.1} parent=1 // pred_check_branch
      %20 = sbr.rel (0) target = $region9
    $region8: #{tpu_custom_call.1} parent=1 // pred_region
      %22 = dma.done [#allocation3], 128
    $region9: #{tpu_custom_call.1} parent=1 // pred_fallthru
      _
    %v23 = vld [vmem:[#allocation2] sm:$0xff]
    %24 = vrot.lane.b32.xlu0 %v23, 1
    %v25 = vpop.permute.xlu0 %24
    %26 = vst [vmem:[#allocation5] sm:$0xff] %v25
    // Predicated region
    $region10: #{tpu_custom_call.1} parent=1 // pred_check
      _
    $region11: #{tpu_custom_call.1} parent=1 // pred_check_branch
      %28 = sbr.rel (0) target = $region13
    $region12: #{tpu_custom_call.1} parent=1 // pred_region
      %30 = vsyncadd [#allocation4], 0
      %s32 = sshll.u32 [#allocation5], 4
      %s33 = int_to_ptr.vmem [resolvable:$true] %s32
      %s34 = sshll.u32 %s1, 4
      %s35 = int_to_ptr.hbm [resolvable:$true] %s34
      %37 = dma.vmem_to_hbm [thread:$0]  %s33, 128, %s35, [#allocation4]
    $region13: #{tpu_custom_call.1} parent=1 // pred_fallthru
      _
    // Predicated region
    $region14: #{tpu_custom_call.1} parent=1 // pred_check
      _
    $region15: #{tpu_custom_call.1} parent=1 // pred_check_branch
      %39 = sbr.rel (0) target = $region17
    $region16: #{tpu_custom_call.1} parent=1 // pred_region
      %41 = dma.done [#allocation4], 128
    $region17: #{tpu_custom_call.1} parent=1 // pred_fallthru
      _
    %42 = vsyncpa [#allocation3], 1
    %43 = vsyncpa [#allocation4], 1

</llo_original>
